<compile_context>
chip_gen: v7x
topology: tpu7x:2x2x1
jax: 0.10.0
libtpu: 0.0.40
codegen_flags: <defaults>
</compile_context>

<pallas_src>
import math
import functools

import jax
import jax.numpy as jnp
from jax.experimental import pallas as pl
from jax.experimental.pallas import tpu as pltpu

LOG_STD_MAX = 2.0
LOG_STD_MIN = -20.0
_HALF_LOG_2PI = 0.5 * math.log(2.0 * math.pi)
_LOG2 = math.log(2.0)
_LANE = 128


def _round_up(x, m):
    return ((x + m - 1) // m) * m


def _softplus(x):
    # numerically stable softplus = max(x,0) + log1p(exp(-|x|))
    return jnp.maximum(x, 0.0) + jnp.log1p(jnp.exp(-jnp.abs(x)))


# --------------------------------------------------------------------------
# Kernel
# --------------------------------------------------------------------------
def _actor_kernel(n_hidden, deterministic, with_logprob, action_dim, a_pad, *refs):
    """refs = (state, [eps], [W,b]*n_hidden, W_head, b_head, out)."""
    p = 0
    x = refs[p][...]
    p += 1
    if deterministic:
        eps = None
    else:
        eps = refs[p][...]
        p += 1

    # a_net: Linear + ReLU per layer (output activation is also ReLU).
    # bf16 matmul operands, f32 accumulation, f32 elementwise.
    for _ in range(n_hidden):
        w = refs[p][...]
        b = refs[p + 1][...]
        p += 2
        x = jnp.maximum(
            jnp.dot(x.astype(w.dtype), w, preferred_element_type=jnp.float32) + b,
            0.0,
        )

    # Fused [mu | log_std] head: one MXU matmul over 2*a_pad lanes.
    w_h = refs[p][...]
    b_h = refs[p + 1][...]
    p += 2
    out_ref = refs[p]

    head = jnp.dot(x.astype(w_h.dtype), w_h, preferred_element_type=jnp.float32) + b_h
    mu = head[:, :a_pad]
    log_std = jnp.clip(head[:, a_pad:], LOG_STD_MIN, LOG_STD_MAX)
    std = jnp.exp(log_std)

    if deterministic:
        u = mu
    else:
        u = mu + std * eps  # dist.rsample() == mu + std * eps

    a = jnp.tanh(u)

    if with_logprob:
        # (u - mu) / std == eps exactly; avoid the divide.
        z = jnp.zeros_like(u) if deterministic else eps
        log_prob_u = -0.5 * z * z - log_std - _HALF_LOG_2PI
        corr = 2.0 * (_LOG2 - u - _softplus(-2.0 * u))
        lane = jax.lax.broadcasted_iota(jnp.int32, a.shape, 1)
        contrib = jnp.where(lane < action_dim, log_prob_u - corr, 0.0)
        logp = jnp.sum(contrib, axis=1, keepdims=True)  # single fused reduction
        # Pack logp into lane `action_dim` of the lane-dense output block.
        out = jnp.where(lane == action_dim, logp, a)
    else:
        out = a

    out_ref[...] = out.astype(out_ref.dtype)


# --------------------------------------------------------------------------
# Parameter construction / packing
# --------------------------------------------------------------------------
def init_actor_params(key, state_dim, action_dim, hid_shape, hid_layers):
    """Logical f32 params mimicking nn.Linear's U(-1/sqrt(fan_in), 1/sqrt(fan_in))."""
    layers = [state_dim] + list(hid_shape) * hid_layers
    params = {"hidden": []}

    def linear(key, fan_in, fan_out):
        kw, kb = jax.random.split(key)
        bound = 1.0 / math.sqrt(fan_in)
        w = jax.random.uniform(kw, (fan_in, fan_out), jnp.float32, -bound, bound)
        b = jax.random.uniform(kb, (1, fan_out), jnp.float32, -bound, bound)
        return w, b

    keys = jax.random.split(key, len(layers) + 1)
    for i in range(len(layers) - 1):
        params["hidden"].append(linear(keys[i], layers[i], layers[i + 1]))
    params["mu_w"], params["mu_b"] = linear(keys[-2], layers[-1], action_dim)
    params["ls_w"], params["ls_b"] = linear(keys[-1], layers[-1], action_dim)
    return params


def pack_actor_params(params, weight_dtype=jnp.bfloat16):
    """Pad feature dims to multiples of 128 lanes, fuse mu/log_std heads,
    cast weights to `weight_dtype` (biases stay f32)."""
    state_dim = params["hidden"][0][0].shape[0] if params["hidden"] else params["mu_w"].shape[0]
    layers = []
    prev = state_dim
    for w, b in params["hidden"]:
        fi, fo = w.shape
        fo_p = _round_up(fo, _LANE)
        wp = jnp.zeros((prev, fo_p), jnp.float32).at[:fi, :fo].set(w)
        bp = jnp.zeros((1, fo_p), jnp.float32).at[:, :fo].set(b.reshape(1, -1))
        layers.append((wp.astype(weight_dtype), bp))
        prev = fo_p

    action_dim = params["mu_w"].shape[1]
    fi = params["mu_w"].shape[0]
    # +1 lane reserved so logp can ride in lane `action_dim` of the output.
    a_pad = _round_up(action_dim + 1, _LANE)
    wh = jnp.zeros((prev, 2 * a_pad), jnp.float32)
    wh = wh.at[:fi, :action_dim].set(params["mu_w"])
    wh = wh.at[:fi, a_pad:a_pad + action_dim].set(params["ls_w"])
    bh = jnp.zeros((1, 2 * a_pad), jnp.float32)
    bh = bh.at[:, :action_dim].set(params["mu_b"].reshape(1, -1))
    bh = bh.at[:, a_pad:a_pad + action_dim].set(params["ls_b"].reshape(1, -1))

    return {
        "layers": layers,
        "head": (wh.astype(weight_dtype), bh),
        "state_dim": state_dim,
        "action_dim": action_dim,
        "a_pad": a_pad,
    }


# --------------------------------------------------------------------------
# Wrapper
# --------------------------------------------------------------------------
def _vmem_cap_bytes():
    try:
        info = pltpu.get_tpu_info()
        cap = getattr(info, "vmem_capacity_bytes", None)
        if cap:
            return int(cap) * 3 // 4  # leave headroom (v7x has only 64 MiB)
    except Exception:
        pass
    return 48 * 1024 * 1024


def actor_forward(packed, state, eps=None, *, deterministic=False, with_logprob=True,
                  block_batch=256):
    A = packed["action_dim"]
    a_pad = packed["a_pad"]
    state_dim = packed["state_dim"]
    batch = state.shape[0]

    tb = min(block_batch, _round_up(batch, 8))
    batch_pad = _round_up(batch, tb)
    nb = batch_pad // tb

    state_p = state
    if batch_pad != batch:
        state_p = jnp.pad(state, ((0, batch_pad - batch), (0, 0)))

    inputs = [state_p]
    in_specs = [pl.BlockSpec((tb, state_dim), lambda i: (i, 0))]

    if not deterministic:
        assert eps is not None, "eps required when deterministic=False"
        eps_p = jnp.zeros((batch_pad, a_pad), jnp.float32).at[:batch, :A].set(eps)
        inputs.append(eps_p)
        in_specs.append(pl.BlockSpec((tb, a_pad), lambda i: (i, 0)))

    all_layers = packed["layers"] + [packed["head"]]
    for w, b in all_layers:
        inputs += [w, b]
        in_specs += [pl.BlockSpec(w.shape, lambda i: (0, 0)),     # resident weights
                     pl.BlockSpec(b.shape, lambda i: (0, 0))]

    out_spec = pl.BlockSpec((tb, a_pad), lambda i: (i, 0))        # lane-dense output

    # VMEM budget: double-buffered IO tiles + resident params + activation scratch.
    param_bytes = sum(int(w.nbytes) + int(b.nbytes) for w, b in all_layers)
    max_feat = max([state_dim, 2 * a_pad] + [w.shape[1] for w, _ in all_layers])
    io_bytes = 2 * tb * (state_dim + 2 * a_pad) * 4
    scratch_bytes = 6 * tb * max_feat * 4
    vmem_limit = int(min(_vmem_cap_bytes(),
                         max(8 * 1024 * 1024,
                             2 * param_bytes + io_bytes + scratch_bytes + (4 << 20))))

    kernel = functools.partial(
        _actor_kernel, len(packed["layers"]), deterministic, with_logprob, A, a_pad)

    out = pl.pallas_call(
        kernel,
        out_shape=jax.ShapeDtypeStruct((batch_pad, a_pad), jnp.float32),
        grid=(nb,),
        in_specs=in_specs,
        out_specs=out_spec,
        compiler_params=pltpu.CompilerParams(
            dimension_semantics=("parallel",),
            vmem_limit_bytes=vmem_limit,
        ),
    )(*inputs)

    a = out[:batch, :A]
    logp = out[:batch, A:A + 1] if with_logprob else None
    return a, logp


# --------------------------------------------------------------------------
# Pure-JAX reference (mirrors the kernel's bf16-weight math on the real lanes)
# --------------------------------------------------------------------------
def actor_forward_ref(packed, state, eps=None, *, deterministic=False, with_logprob=True):
    A = packed["action_dim"]
    a_pad = packed["a_pad"]
    x = state
    for w, b in packed["layers"]:
        x = jnp.maximum(
            jnp.dot(x.astype(w.dtype), w, preferred_element_type=jnp.float32) + b, 0.0)
    wh, bh = packed["head"]
    head = jnp.dot(x.astype(wh.dtype), wh, preferred_element_type=jnp.float32) + bh
    mu = head[:, :A]
    log_std = jnp.clip(head[:, a_pad:a_pad + A], LOG_STD_MIN, LOG_STD_MAX)
    std = jnp.exp(log_std)
    if deterministic:
        u, z = mu, jnp.zeros_like(mu)
    else:
        u, z = mu + std * eps, eps
    a = jnp.tanh(u)
    if not with_logprob:
        return a, None
    log_prob_u = -0.5 * z * z - log_std - _HALF_LOG_2PI
    corr = 2.0 * (_LOG2 - u - _softplus(-2.0 * u))
    logp = jnp.sum(log_prob_u - corr, axis=1, keepdims=True)
    return a, logp


# --------------------------------------------------------------------------
if __name__ == "__main__":
    # Small, deterministic example shapes.
    state_dim, action_dim = 16, 4
    hid_shape, hid_layers = (32,), 2
    batch = 8

    key = jax.random.PRNGKey(0)
    k_params, k_state, k_eps = jax.random.split(key, 3)

    params = init_actor_params(k_params, state_dim, action_dim, hid_shape, hid_layers)
    packed = pack_actor_params(params, weight_dtype=jnp.bfloat16)

    state = jax.random.normal(k_state, (batch, state_dim), jnp.float32)
    eps = jax.random.normal(k_eps, (batch, action_dim), jnp.float32)  # rsample noise

    # Stochastic path with log-prob.
    a, logp = actor_forward(packed, state, eps, deterministic=False, with_logprob=True)
    a = jax.block_until_ready(a)
    logp = jax.block_until_ready(logp)
    a_ref, logp_ref = actor_forward_ref(packed, state, eps,
                                        deterministic=False, with_logprob=True)
    assert a.shape == (batch, action_dim) and logp.shape == (batch, 1)
    assert jnp.allclose(a, a_ref, atol=1e-3, rtol=1e-3)
    assert jnp.allclose(logp, logp_ref, atol=1e-2, rtol=1e-2)

    # Deterministic inference path (no eps DMA, no log-prob).
    a_det, logp_det = actor_forward(packed, state, deterministic=True, with_logprob=False)
    a_det = jax.block_until_ready(a_det)
    a_det_ref, _ = actor_forward_ref(packed, state, deterministic=True, with_logprob=False)
    assert logp_det is None
    assert jnp.allclose(a_det, a_det_ref, atol=1e-3, rtol=1e-3)

    print("KERNEL_OK")
</pallas_src>

<mosaic_0001>
module attributes {stable_mosaic.version = 11 : i64} {
  func.func @_actor_kernel(%arg0: i32, %arg1: memref<8x16xf32, #tpu.memory_space<vmem>>, %arg2: memref<8x128xf32, #tpu.memory_space<vmem>>, %arg3: memref<16x128xbf16, #tpu.memory_space<vmem>>, %arg4: memref<1x128xf32, #tpu.memory_space<vmem>>, %arg5: memref<128x128xbf16, #tpu.memory_space<vmem>>, %arg6: memref<1x128xf32, #tpu.memory_space<vmem>>, %arg7: memref<128x256xbf16, #tpu.memory_space<vmem>>, %arg8: memref<1x256xf32, #tpu.memory_space<vmem>>, %arg9: memref<8x128xf32, #tpu.memory_space<vmem>>) attributes {dimension_semantics = [#tpu.dimension_semantics<parallel>], iteration_bounds = array<i64: 1>, scalar_prefetch = 0 : i64, scratch_operands = 0 : i64, tpu.core_type = #tpu.core_type<tc>, window_params = [{transform_indices = @transform_0, window_bounds = array<i64: 8, 16>}, {transform_indices = @transform_1, window_bounds = array<i64: 8, 128>}, {pipeline_mode = #tpu.pipeline_mode<synchronous>, transform_indices = @transform_2, window_bounds = array<i64: 16, 128>}, {pipeline_mode = #tpu.pipeline_mode<synchronous>, transform_indices = @transform_3, window_bounds = array<i64: 1, 128>}, {pipeline_mode = #tpu.pipeline_mode<synchronous>, transform_indices = @transform_4, window_bounds = array<i64: 128, 128>}, {pipeline_mode = #tpu.pipeline_mode<synchronous>, transform_indices = @transform_5, window_bounds = array<i64: 1, 128>}, {pipeline_mode = #tpu.pipeline_mode<synchronous>, transform_indices = @transform_6, window_bounds = array<i64: 128, 256>}, {pipeline_mode = #tpu.pipeline_mode<synchronous>, transform_indices = @transform_7, window_bounds = array<i64: 1, 256>}, {transform_indices = @transform_8, window_bounds = array<i64: 8, 128>}]} {
    %c0 = arith.constant 0 : index
    %c0_0 = arith.constant 0 : index
    %0 = vector.load %arg1[%c0, %c0_0] : memref<8x16xf32, #tpu.memory_space<vmem>>, vector<8x16xf32>
    %c0_1 = arith.constant 0 : index
    %c0_2 = arith.constant 0 : index
    %1 = vector.load %arg2[%c0_1, %c0_2] : memref<8x128xf32, #tpu.memory_space<vmem>>, vector<8x128xf32>
    %c0_3 = arith.constant 0 : index
    %c0_4 = arith.constant 0 : index
    %2 = vector.load %arg3[%c0_3, %c0_4] : memref<16x128xbf16, #tpu.memory_space<vmem>>, vector<16x128xbf16>
    %c0_5 = arith.constant 0 : index
    %c0_6 = arith.constant 0 : index
    %3 = vector.load %arg4[%c0_5, %c0_6] : memref<1x128xf32, #tpu.memory_space<vmem>>, vector<1x128xf32>
    %4 = arith.truncf %0 : vector<8x16xf32> to vector<8x16xbf16>
    %cst = arith.constant dense<0.000000e+00> : vector<8x128xf32>
    %5 = tpu.matmul %4, %2, %cst {dimension_numbers = #tpu.dot_dimension_numbers<[1], [0], [0], [1], [0, 0, 1, 1], [], []>} : vector<8x16xbf16>, vector<16x128xbf16>, vector<8x128xf32> -> vector<8x128xf32>
    %6 = vector.broadcast %3 : vector<1x128xf32> to vector<8x128xf32>
    %7 = arith.addf %5, %6 : vector<8x128xf32>
    %cst_7 = arith.constant 0.000000e+00 : f32
    %8 = vector.broadcast %cst_7 : f32 to vector<8x128xf32>
    %9 = arith.maximumf %7, %8 : vector<8x128xf32>
    %c0_8 = arith.constant 0 : index
    %c0_9 = arith.constant 0 : index
    %10 = vector.load %arg5[%c0_8, %c0_9] : memref<128x128xbf16, #tpu.memory_space<vmem>>, vector<128x128xbf16>
    %c0_10 = arith.constant 0 : index
    %c0_11 = arith.constant 0 : index
    %11 = vector.load %arg6[%c0_10, %c0_11] : memref<1x128xf32, #tpu.memory_space<vmem>>, vector<1x128xf32>
    %12 = arith.truncf %9 : vector<8x128xf32> to vector<8x128xbf16>
    %cst_12 = arith.constant dense<0.000000e+00> : vector<8x128xf32>
    %13 = tpu.matmul %12, %10, %cst_12 {dimension_numbers = #tpu.dot_dimension_numbers<[1], [0], [0], [1], [0, 0, 1, 1], [], []>} : vector<8x128xbf16>, vector<128x128xbf16>, vector<8x128xf32> -> vector<8x128xf32>
    %14 = vector.broadcast %11 : vector<1x128xf32> to vector<8x128xf32>
    %15 = arith.addf %13, %14 : vector<8x128xf32>
    %cst_13 = arith.constant 0.000000e+00 : f32
    %16 = vector.broadcast %cst_13 : f32 to vector<8x128xf32>
    %17 = arith.maximumf %15, %16 : vector<8x128xf32>
    %c0_14 = arith.constant 0 : index
    %c0_15 = arith.constant 0 : index
    %18 = vector.load %arg7[%c0_14, %c0_15] : memref<128x256xbf16, #tpu.memory_space<vmem>>, vector<128x256xbf16>
    %c0_16 = arith.constant 0 : index
    %c0_17 = arith.constant 0 : index
    %19 = vector.load %arg8[%c0_16, %c0_17] : memref<1x256xf32, #tpu.memory_space<vmem>>, vector<1x256xf32>
    %20 = arith.truncf %17 : vector<8x128xf32> to vector<8x128xbf16>
    %cst_18 = arith.constant dense<0.000000e+00> : vector<8x256xf32>
    %21 = tpu.matmul %20, %18, %cst_18 {dimension_numbers = #tpu.dot_dimension_numbers<[1], [0], [0], [1], [0, 0, 1, 1], [], []>} : vector<8x128xbf16>, vector<128x256xbf16>, vector<8x256xf32> -> vector<8x256xf32>
    %22 = vector.broadcast %19 : vector<1x256xf32> to vector<8x256xf32>
    %23 = arith.addf %21, %22 : vector<8x256xf32>
    %24 = vector.extract_strided_slice %23 {offsets = [0, 0], sizes = [8, 128], strides = [1, 1]} : vector<8x256xf32> to vector<8x128xf32>
    %25 = vector.extract_strided_slice %23 {offsets = [0, 128], sizes = [8, 128], strides = [1, 1]} : vector<8x256xf32> to vector<8x128xf32>
    %cst_19 = arith.constant -2.000000e+01 : f32
    %cst_20 = arith.constant 2.000000e+00 : f32
    %26 = vector.broadcast %cst_19 : f32 to vector<8x128xf32>
    %27 = arith.maximumf %26, %25 : vector<8x128xf32>
    %28 = vector.broadcast %cst_20 : f32 to vector<8x128xf32>
    %29 = arith.minimumf %28, %27 : vector<8x128xf32>
    %30 = math.exp %29 : vector<8x128xf32>
    %31 = arith.mulf %30, %1 : vector<8x128xf32>
    %32 = arith.addf %24, %31 : vector<8x128xf32>
    %33 = math.tanh %32 : vector<8x128xf32>
    %cst_21 = arith.constant -5.000000e-01 : f32
    %34 = vector.broadcast %cst_21 : f32 to vector<8x128xf32>
    %35 = arith.mulf %34, %1 : vector<8x128xf32>
    %36 = arith.mulf %35, %1 : vector<8x128xf32>
    %37 = arith.subf %36, %29 : vector<8x128xf32>
    %cst_22 = arith.constant 0.918938517 : f32
    %38 = vector.broadcast %cst_22 : f32 to vector<8x128xf32>
    %39 = arith.subf %37, %38 : vector<8x128xf32>
    %cst_23 = arith.constant 0.693147182 : f32
    %40 = vector.broadcast %cst_23 : f32 to vector<8x128xf32>
    %41 = arith.subf %40, %32 : vector<8x128xf32>
    %cst_24 = arith.constant -2.000000e+00 : f32
    %42 = vector.broadcast %cst_24 : f32 to vector<8x128xf32>
    %43 = arith.mulf %42, %32 : vector<8x128xf32>
    %cst_25 = arith.constant 0.000000e+00 : f32
    %44 = vector.broadcast %cst_25 : f32 to vector<8x128xf32>
    %45 = arith.maximumf %43, %44 : vector<8x128xf32>
    %46 = math.absf %43 : vector<8x128xf32>
    %cst_26 = arith.constant 0.000000e+00 : f32
    %47 = vector.broadcast %cst_26 : f32 to vector<8x128xf32>
    %48 = arith.subf %47, %46 : vector<8x128xf32>
    %49 = math.exp %48 : vector<8x128xf32>
    %50 = math.log1p %49 : vector<8x128xf32>
    %51 = arith.addf %45, %50 : vector<8x128xf32>
    %52 = arith.subf %41, %51 : vector<8x128xf32>
    %cst_27 = arith.constant 2.000000e+00 : f32
    %53 = vector.broadcast %cst_27 : f32 to vector<8x128xf32>
    %54 = arith.mulf %53, %52 : vector<8x128xf32>
    %55 = tpu.iota {dimensions = array<i32: 1>} : vector<8x128xi32>
    %c4_i32 = arith.constant 4 : i32
    %56 = vector.broadcast %c4_i32 : i32 to vector<8x128xi32>
    %57 = arith.cmpi slt, %55, %56 : vector<8x128xi32>
    %58 = arith.subf %39, %54 : vector<8x128xf32>
    %cst_28 = arith.constant 0.000000e+00 : f32
    %59 = vector.broadcast %cst_28 : f32 to vector<8x128xf32>
    %60 = arith.select %57, %58, %59 : vector<8x128xi1>, vector<8x128xf32>
    %cst_29 = arith.constant dense<0.000000e+00> : vector<8xf32>
    %61 = vector.multi_reduction <add>, %60, %cst_29 [1] : vector<8x128xf32> to vector<8xf32>
    %62 = vector.shape_cast %61 : vector<8xf32> to vector<8x1xf32>
    %c4_i32_30 = arith.constant 4 : i32
    %63 = vector.broadcast %c4_i32_30 : i32 to vector<8x128xi32>
    %64 = arith.cmpi eq, %55, %63 : vector<8x128xi32>
    %65 = vector.shape_cast %62 : vector<8x1xf32> to vector<8x1xf32>
    %66 = vector.broadcast %65 : vector<8x1xf32> to vector<8x128xf32>
    %67 = arith.select %64, %66, %33 : vector<8x128xi1>, vector<8x128xf32>
    %c0_31 = arith.constant 0 : index
    %c0_32 = arith.constant 0 : index
    %68 = vector.load %arg9[%c0_31, %c0_32] : memref<8x128xf32, #tpu.memory_space<vmem>>, vector<8x128xf32>
    tpu.vector_store %arg9[%c0_31, %c0_32], %67 {strides = array<i32>} : memref<8x128xf32, #tpu.memory_space<vmem>>, vector<8x128xf32>,
    return
  }
  func.func @transform_0(%arg0: i32) -> (i32, i32) {
    %c0_i32 = arith.constant 0 : i32
    %c0_i32_0 = arith.constant 0 : i32
    return %arg0, %c0_i32 : i32, i32
  }
  func.func @transform_1(%arg0: i32) -> (i32, i32) {
    %c0_i32 = arith.constant 0 : i32
    %c0_i32_0 = arith.constant 0 : i32
    return %arg0, %c0_i32 : i32, i32
  }
  func.func @transform_2(%arg0: i32) -> (i32, i32) {
    %c0_i32 = arith.constant 0 : i32
    %c0_i32_0 = arith.constant 0 : i32
    %c0_i32_1 = arith.constant 0 : i32
    return %c0_i32, %c0_i32_0 : i32, i32
  }
  func.func @transform_3(%arg0: i32) -> (i32, i32) {
    %c0_i32 = arith.constant 0 : i32
    %c0_i32_0 = arith.constant 0 : i32
    %c0_i32_1 = arith.constant 0 : i32
    return %c0_i32, %c0_i32_0 : i32, i32
  }
  func.func @transform_4(%arg0: i32) -> (i32, i32) {
    %c0_i32 = arith.constant 0 : i32
    %c0_i32_0 = arith.constant 0 : i32
    %c0_i32_1 = arith.constant 0 : i32
    return %c0_i32, %c0_i32_0 : i32, i32
  }
  func.func @transform_5(%arg0: i32) -> (i32, i32) {
    %c0_i32 = arith.constant 0 : i32
    %c0_i32_0 = arith.constant 0 : i32
    %c0_i32_1 = arith.constant 0 : i32
    return %c0_i32, %c0_i32_0 : i32, i32
  }
  func.func @transform_6(%arg0: i32) -> (i32, i32) {
    %c0_i32 = arith.constant 0 : i32
    %c0_i32_0 = arith.constant 0 : i32
    %c0_i32_1 = arith.constant 0 : i32
    return %c0_i32, %c0_i32_0 : i32, i32
  }
  func.func @transform_7(%arg0: i32) -> (i32, i32) {
    %c0_i32 = arith.constant 0 : i32
    %c0_i32_0 = arith.constant 0 : i32
    %c0_i32_1 = arith.constant 0 : i32
    return %c0_i32, %c0_i32_0 : i32, i32
  }
  func.func @transform_8(%arg0: i32) -> (i32, i32) {
    %c0_i32 = arith.constant 0 : i32
    %c0_i32_0 = arith.constant 0 : i32
    return %arg0, %c0_i32 : i32, i32
  }
}

</mosaic_0001>

<llo_original>
// kernel: tpu_custom_call.1
$region0: #{tpu_custom_call.1}
  #allocation0 [shape = 'u32[]', space=smem, size = 0x4, offset = 0x4, fixed_abs, tag = 'smem constant byte address 0x4 - core index']
  #allocation1 [shape = 'u32[144,128]{1,0:T(1,128)}', space=vmem, size = 0x12000, scoped, tag = 'internal scratch']
  %s0 = inlined_call_operand.hbm [shape: f32[8,16], index: 0, kind: input, shape index: {}]
  %s1 = inlined_call_operand.hbm [shape: f32[8,128], index: 1, kind: input, shape index: {}]
  %s2 = inlined_call_operand.hbm [shape: bf16[16,128], index: 2, kind: input, shape index: {}]
  %s3 = inlined_call_operand.vmem [shape: f32[1,128], index: 3, kind: input, shape index: {}]
  %s4 = inlined_call_operand.hbm [shape: bf16[128,128], index: 4, kind: input, shape index: {}]
  %s5 = inlined_call_operand.vmem [shape: f32[1,128], index: 5, kind: input, shape index: {}]
  %s6 = inlined_call_operand.hbm [shape: bf16[128,256], index: 6, kind: input, shape index: {}]
  %s7 = inlined_call_operand.vmem [shape: f32[1,256], index: 7, kind: input, shape index: {}]
  %s8 = inlined_call_operand.hbm [shape: f32[8,128], index: 8, kind: output, shape index: {}]
  %s9 = sld [smem:[#allocation0]]
  $region62: #{tpu_custom_call.1} parent=0
    _
  %s11 = ssub.s32 1, %s9
  %s12 = scalar_select 0, %s11, %s9
  $region1: #{tpu_custom_call.1} parent=0
    #allocation2 [shape = 'u8[4096]{0}', space=vmem, size = 0x1000, scoped, tag = 'input window, operand 0, single buffered']
    #allocation3 [shape = 's32[1]{0}', space=sflag, size = 0x4, scoped, tag = 'scoped memory for tpu_custom_call.1']
    #allocation4 [shape = 's32[1]{0}', space=sflag, size = 0x4, scoped, tag = 'scoped memory for tpu_custom_call.1']
    #allocation5 [shape = 'u8[4096]{0}', space=vmem, size = 0x1000, scoped, tag = 'input window, operand 1, single buffered']
    #allocation6 [shape = 's32[1]{0}', space=sflag, size = 0x4, scoped, tag = 'scoped memory for tpu_custom_call.1']
    #allocation7 [shape = 'u8[4096]{0}', space=vmem, size = 0x1000, scoped, tag = 'input window, operand 2, single buffered']
    #allocation8 [shape = 'u8[32768]{0}', space=vmem, size = 0x8000, scoped, tag = 'input window, operand 4, single buffered']
    #allocation9 [shape = 's32[1]{0}', space=sflag, size = 0x4, scoped, tag = 'scoped memory for tpu_custom_call.1']
    #allocation10 [shape = 'u8[65536]{0}', space=vmem, size = 0x10000, scoped, tag = 'input window, operand 6, single buffered']
    #allocation11 [shape = 'u8[4096]{0}', space=vmem, size = 0x1000, scoped, tag = 'output window, operand 0, single buffered']
    %13 = vsyncpa [#allocation3], 0
    %14 = vsyncpa [#allocation6], 0
    %15 = vsyncpa [#allocation9], 0
    %16 = vsyncpa [#allocation4], 0
    // Predicated region
    $region2: #{tpu_custom_call.1} parent=1 // pred_check
      _
    $region3: #{tpu_custom_call.1} parent=1 // pred_check_branch
      %18 = sbr.rel (0) target = $region5
    $region4: #{tpu_custom_call.1} parent=1 // pred_region
      %s20 = ssub.s32 128, 128
      %21 = vsyncadd [#allocation3], %s20
      %s23 = sshll.u32 [#allocation2], 4
      %s24 = int_to_ptr.vmem [resolvable:$true] %s23
      %26 = dma.hbm_to_vmem [thread:$0]  %s0, 128, %s24, [#allocation3]
    $region5: #{tpu_custom_call.1} parent=1 // pred_fallthru
      _
    // Predicated region
    $region6: #{tpu_custom_call.1} parent=1 // pred_check
      _
    $region7: #{tpu_custom_call.1} parent=1 // pred_check_branch
      %28 = sbr.rel (0) target = $region9
    $region8: #{tpu_custom_call.1} parent=1 // pred_region
      %s30 = ssub.s32 128, 128
      %31 = vsyncadd [#allocation6], %s30
      %s33 = sshll.u32 [#allocation5], 4
      %s34 = int_to_ptr.vmem [resolvable:$true] %s33
      %36 = dma.hbm_to_vmem [thread:$0]  %s1, 128, %s34, [#allocation6]
    $region9: #{tpu_custom_call.1} parent=1 // pred_fallthru
      _
    // Predicated region
    $region10: #{tpu_custom_call.1} parent=1 // pred_check
      _
    $region11: #{tpu_custom_call.1} parent=1 // pred_check_branch
      %38 = sbr.rel (0) target = $region13
    $region12: #{tpu_custom_call.1} parent=1 // pred_region
      %s40 = ssub.s32 128, 128
      %41 = vsyncadd [#allocation6], %s40
      %s42 = sshll.u32 [#allocation7], 4
      %s43 = int_to_ptr.vmem [resolvable:$true] %s42
      %48 = dma.hbm_to_vmem [thread:$0]  %s2, 128, %s43, [#allocation6], 64, 64, 4
    $region13: #{tpu_custom_call.1} parent=1 // pred_fallthru
      _
    // Predicated region
    $region14: #{tpu_custom_call.1} parent=1 // pred_check
      _
    $region15: #{tpu_custom_call.1} parent=1 // pred_check_branch
      %50 = sbr.rel (0) target = $region17
    $region16: #{tpu_custom_call.1} parent=1 // pred_region
      _
    $region17: #{tpu_custom_call.1} parent=1 // pred_fallthru
      _
    // Predicated region
    $region18: #{tpu_custom_call.1} parent=1 // pred_check
      _
    $region19: #{tpu_custom_call.1} parent=1 // pred_check_branch
      %52 = sbr.rel (0) target = $region21
    $region20: #{tpu_custom_call.1} parent=1 // pred_region
      %s54 = ssub.s32 1024, 1024
      %55 = vsyncadd [#allocation9], %s54
      %s56 = sshll.u32 [#allocation8], 4
      %s57 = int_to_ptr.vmem [resolvable:$true] %s56
      %62 = dma.hbm_to_vmem [thread:$0]  %s4, 1024, %s57, [#allocation9], 64, 64, 4
    $region21: #{tpu_custom_call.1} parent=1 // pred_fallthru
      _
    // Predicated region
    $region22: #{tpu_custom_call.1} parent=1 // pred_check
      _
    $region23: #{tpu_custom_call.1} parent=1 // pred_check_branch
      %64 = sbr.rel (0) target = $region25
    $region24: #{tpu_custom_call.1} parent=1 // pred_region
      _
    $region25: #{tpu_custom_call.1} parent=1 // pred_fallthru
      _
    // Predicated region
    $region26: #{tpu_custom_call.1} parent=1 // pred_check
      _
    $region27: #{tpu_custom_call.1} parent=1 // pred_check_branch
      %66 = sbr.rel (0) target = $region29
    $region28: #{tpu_custom_call.1} parent=1 // pred_region
      %s68 = ssub.s32 2048, 2048
      %69 = vsyncadd [#allocation9], %s68
      %s70 = sshll.u32 [#allocation10], 4
      %s71 = int_to_ptr.vmem [resolvable:$true] %s70
      %76 = dma.hbm_to_vmem [thread:$0]  %s6, 2048, %s71, [#allocation9], 128, 128, 8
    $region29: #{tpu_custom_call.1} parent=1 // pred_fallthru
      _
    // Predicated region
    $region30: #{tpu_custom_call.1} parent=1 // pred_check
      _
    $region31: #{tpu_custom_call.1} parent=1 // pred_check_branch
      %78 = sbr.rel (0) target = $region33
    $region32: #{tpu_custom_call.1} parent=1 // pred_region
      _
    $region33: #{tpu_custom_call.1} parent=1 // pred_fallthru
      _
    // Predicated region
    $region34: #{tpu_custom_call.1} parent=1 // pred_check
      _
    $region35: #{tpu_custom_call.1} parent=1 // pred_check_branch
      %80 = sbr.rel (0) target = $region37
    $region36: #{tpu_custom_call.1} parent=1 // pred_region
      %81 = dma.done [#allocation3], 128
    $region37: #{tpu_custom_call.1} parent=1 // pred_fallthru
      _
    // Predicated region
    $region38: #{tpu_custom_call.1} parent=1 // pred_check
      _
    $region39: #{tpu_custom_call.1} parent=1 // pred_check_branch
      %83 = sbr.rel (0) target = $region41
    $region40: #{tpu_custom_call.1} parent=1 // pred_region
      %84 = dma.done [#allocation6], 128
    $region41: #{tpu_custom_call.1} parent=1 // pred_fallthru
      _
    // Predicated region
    $region42: #{tpu_custom_call.1} parent=1 // pred_check
      _
    $region43: #{tpu_custom_call.1} parent=1 // pred_check_branch
      %86 = sbr.rel (0) target = $region45
    $region44: #{tpu_custom_call.1} parent=1 // pred_region
      %87 = dma.done [#allocation6], 128
    $region45: #{tpu_custom_call.1} parent=1 // pred_fallthru
      _
    // Predicated region
    $region46: #{tpu_custom_call.1} parent=1 // pred_check
      _
    $region47: #{tpu_custom_call.1} parent=1 // pred_check_branch
      %89 = sbr.rel (0) target = $region49
    $region48: #{tpu_custom_call.1} parent=1 // pred_region
      %90 = dma.done [#allocation9], 1024
    $region49: #{tpu_custom_call.1} parent=1 // pred_fallthru
      _
    // Predicated region
    $region50: #{tpu_custom_call.1} parent=1 // pred_check
      _
    $region51: #{tpu_custom_call.1} parent=1 // pred_check_branch
      %92 = sbr.rel (0) target = $region53
    $region52: #{tpu_custom_call.1} parent=1 // pred_region
      %93 = dma.done [#allocation9], 2048
    $region53: #{tpu_custom_call.1} parent=1 // pred_fallthru
      _
    %v95 = vld [vmem:[#allocation2] sm:$0xff]
    %v96 = vld [vmem:[#allocation5] sm:$0xff]
    %v97 = vld [vmem:[#allocation7] sm:$0xf]
    %v98 = vld [vmem:[#allocation7 + $0x4] sm:$0xf]
    %v99 = vld [vmem:[%s3] sm:$0x1]
    %v100 = vpack.c.bf16 %v95, %v95
    %v102 = vlaneseq
    %v103 = vshrl.u32 %v102, 7
    %v104 = vsub.s32 0, %v103
    %v105 = vrot.slane %v99, %v104
    %v109 = vunpack.c.l.b16 %v97
    %v110 = vunpack.c.l.b16 %v98
    %v111 = vpack.c.b16 %v110, %v109
    %vm113 = vcmask 130048
    %v115 = vsel %vm113, %v100, 0
    %117 = vmatprep.subr.bf16.mxu0 0
    %118 = vmatpush1.bf16.msra.mxu0 %v111
    %119 = vmatprep.subr.bf16.mxu0 0
    %120 = vmatpush1.bf16.msra.mxu0 0
    %121 = vmatprep.subr.bf16.mxu0 0
    %122 = vmatpush1.bf16.msra.mxu0 0
    %123 = vmatprep.subr.bf16.mxu0 0
    %124 = vmatpush1.bf16.msra.mxu0 0
    %125 = vmatprep.subr.bf16.mxu0 0
    %126 = vmatpush1.bf16.msra.mxu0 0
    %127 = vmatprep.subr.bf16.mxu0 0
    %128 = vmatpush1.bf16.msra.mxu0 0
    %129 = vmatprep.subr.bf16.mxu0 0
    %130 = vmatpush1.bf16.msra.mxu0 0
    %131 = vmatprep.subr.bf16.mxu0 0
    %132 = vmatpush1.bf16.msra.mxu0 0
    %133 = vmatprep.subr.bf16.mxu0 0
    %134 = vmatpush1.bf16.msra.mxu0 0
    %135 = vmatprep.subr.bf16.mxu0 0
    %136 = vmatpush1.bf16.msra.mxu0 0
    %137 = vmatprep.subr.bf16.mxu0 0
    %138 = vmatpush1.bf16.msra.mxu0 0
    %139 = vmatprep.subr.bf16.mxu0 0
    %140 = vmatpush1.bf16.msra.mxu0 0
    %141 = vmatprep.subr.bf16.mxu0 0
    %142 = vmatpush1.bf16.msra.mxu0 0
    %143 = vmatprep.subr.bf16.mxu0 0
    %144 = vmatpush1.bf16.msra.mxu0 0
    %145 = vmatprep.subr.bf16.mxu0 0
    %146 = vmatpush1.bf16.msra.mxu0 0
    %147 = vmatprep.subr.bf16.mxu0 0
    %148 = vmatpush1.bf16.msra.mxu0 0
    %149 = vmatprep.mubr.bf16.mxu0 0
    %150 = vmatmul.mubr.bf16.gmra.mrb[0].mxu0 %v115
    %v151 = vpop.f32.mrb[0].mxu0
    %v152 = vadd.f32 %v105, %v151
    %v153 = vpop.f32.mrb[0].mxu0
    %v154 = vpop.f32.mrb[0].mxu0
    %v155 = vpop.f32.mrb[0].mxu0
    %156 = vdwg.mxu0
    %v157 = vmax.f32 %v152, 0.0
    %v158 = vld [vmem:[#allocation8] sm:$0xf]
    %v159 = vld [vmem:[#allocation8 + $0x4] sm:$0xf]
    %v160 = vld [vmem:[#allocation8 + $0x8] sm:$0xf]
    %v161 = vld [vmem:[#allocation8 + $0xc] sm:$0xf]
    %v162 = vld [vmem:[#allocation8 + $0x10] sm:$0xf]
    %v163 = vld [vmem:[#allocation8 + $0x14] sm:$0xf]
    %v164 = vld [vmem:[#allocation8 + $0x18] sm:$0xf]
    %v165 = vld [vmem:[#allocation8 + $0x1c] sm:$0xf]
    %v166 = vld [vmem:[#allocation8 + $0x20] sm:$0xf]
    %v167 = vld [vmem:[#allocation8 + $0x24] sm:$0xf]
    %v168 = vld [vmem:[#allocation8 + $0x28] sm:$0xf]
    %v169 = vld [vmem:[#allocation8 + $0x2c] sm:$0xf]
    %v170 = vld [vmem:[#allocation8 + $0x30] sm:$0xf]
    %v171 = vld [vmem:[#allocation8 + $0x34] sm:$0xf]
    %v172 = vld [vmem:[#allocation8 + $0x38] sm:$0xf]
    %v173 = vld [vmem:[#allocation8 + $0x3c] sm:$0xf]
    %v174 = vld [vmem:[%s5] sm:$0x1]
    %v175 = vpack.c.bf16 %v157, %v157
    %v177 = vlaneseq
    %v178 = vshrl.u32 %v177, 7
    %v179 = vsub.s32 0, %v178
    %v180 = vrot.slane %v174, %v179
    %v198 = vunpack.c.l.b16 %v158
    %v199 = vunpack.c.l.b16 %v159
    %v200 = vunpack.c.l.b16 %v160
    %v201 = vunpack.c.l.b16 %v161
    %v202 = vunpack.c.l.b16 %v162
    %v203 = vunpack.c.l.b16 %v163
    %v204 = vunpack.c.l.b16 %v164
    %v205 = vunpack.c.l.b16 %v165
    %v206 = vunpack.c.l.b16 %v166
    %v207 = vunpack.c.l.b16 %v167
    %v208 = vunpack.c.l.b16 %v168
    %v209 = vunpack.c.l.b16 %v169
    %v210 = vunpack.c.l.b16 %v170
    %v211 = vunpack.c.l.b16 %v171
    %v212 = vunpack.c.l.b16 %v172
    %v213 = vunpack.c.l.b16 %v173
    %v214 = vpack.c.b16 %v199, %v198
    %v215 = vpack.c.b16 %v201, %v200
    %v216 = vpack.c.b16 %v203, %v202
    %v217 = vpack.c.b16 %v205, %v204
    %v218 = vpack.c.b16 %v207, %v206
    %v219 = vpack.c.b16 %v209, %v208
    %v220 = vpack.c.b16 %v211, %v210
    %v221 = vpack.c.b16 %v213, %v212
    %230 = vmatprep.subr.bf16.mxu0 0
    %231 = vmatpush1.bf16.msra.mxu0 %v214
    %232 = vmatprep.subr.bf16.mxu0 0
    %233 = vmatpush1.bf16.msra.mxu0 %v215
    %234 = vmatprep.subr.bf16.mxu0 0
    %235 = vmatpush1.bf16.msra.mxu0 %v216
    %236 = vmatprep.subr.bf16.mxu0 0
    %237 = vmatpush1.bf16.msra.mxu0 %v217
    %238 = vmatprep.subr.bf16.mxu0 0
    %239 = vmatpush1.bf16.msra.mxu0 %v218
    %240 = vmatprep.subr.bf16.mxu0 0
    %241 = vmatpush1.bf16.msra.mxu0 %v219
    %242 = vmatprep.subr.bf16.mxu0 0
    %243 = vmatpush1.bf16.msra.mxu0 %v220
    %244 = vmatprep.subr.bf16.mxu0 0
    %245 = vmatpush1.bf16.msra.mxu0 %v221
    %246 = vmatprep.subr.bf16.mxu0 0
    %247 = vmatpush1.bf16.msra.mxu0 0
    %248 = vmatprep.subr.bf16.mxu0 0
    %249 = vmatpush1.bf16.msra.mxu0 0
    %250 = vmatprep.subr.bf16.mxu0 0
    %251 = vmatpush1.bf16.msra.mxu0 0
    %252 = vmatprep.subr.bf16.mxu0 0
    %253 = vmatpush1.bf16.msra.mxu0 0
    %254 = vmatprep.subr.bf16.mxu0 0
    %255 = vmatpush1.bf16.msra.mxu0 0
    %256 = vmatprep.subr.bf16.mxu0 0
    %257 = vmatpush1.bf16.msra.mxu0 0
    %258 = vmatprep.subr.bf16.mxu0 0
    %259 = vmatpush1.bf16.msra.mxu0 0
    %260 = vmatprep.subr.bf16.mxu0 0
    %261 = vmatpush1.bf16.msra.mxu0 0
    %262 = vmatprep.mubr.bf16.mxu0 0
    %263 = vmatmul.mubr.bf16.gmra.mrb[0].mxu0 %v175
    %v264 = vpop.f32.mrb[0].mxu0
    %v265 = vadd.f32 %v180, %v264
    %v266 = vpop.f32.mrb[0].mxu0
    %v267 = vpop.f32.mrb[0].mxu0
    %v268 = vpop.f32.mrb[0].mxu0
    %269 = vdwg.mxu0
    %v270 = vmax.f32 %v265, 0.0
    %v271 = vld [vmem:[#allocation10] sm:$0xff]
    %v272 = vld [vmem:[#allocation10 + $0x8] sm:$0xff]
    %v273 = vld [vmem:[#allocation10 + $0x10] sm:$0xff]
    %v274 = vld [vmem:[#allocation10 + $0x18] sm:$0xff]
    %v275 = vld [vmem:[#allocation10 + $0x20] sm:$0xff]
    %v276 = vld [vmem:[#allocation10 + $0x28] sm:$0xff]
    %v277 = vld [vmem:[#allocation10 + $0x30] sm:$0xff]
    %v278 = vld [vmem:[#allocation10 + $0x38] sm:$0xff]
    %v279 = vld [vmem:[#allocation10 + $0x40] sm:$0xff]
    %v280 = vld [vmem:[#allocation10 + $0x48] sm:$0xff]
    %v281 = vld [vmem:[#allocation10 + $0x50] sm:$0xff]
    %v282 = vld [vmem:[#allocation10 + $0x58] sm:$0xff]
    %v283 = vld [vmem:[#allocation10 + $0x60] sm:$0xff]
    %v284 = vld [vmem:[#allocation10 + $0x68] sm:$0xff]
    %v285 = vld [vmem:[#allocation10 + $0x70] sm:$0xff]
    %v286 = vld [vmem:[#allocation10 + $0x78] sm:$0xff]
    %v287 = vld [vmem:[%s7] sm:$0x3]
    %v288 = vpack.c.bf16 %v270, %v270
    %v290 = vlaneseq
    %v291 = vshrl.u32 %v290, 7
    %v292 = vsub.s32 0, %v291
    %v293 = vrot.slane %v287, %v292
    %v294 = vlaneseq
    %v295 = vshrl.u32 %v294, 7
    %v296 = vsub.s32 1, %v295
    %v297 = vrot.slane %v287, %v296
    %v316 = vunpack.c.l.b16 %v271
    %v317 = vunpack.c.h.b16 %v271
    %v318 = vunpack.c.l.b16 %v272
    %v319 = vunpack.c.h.b16 %v272
    %v320 = vunpack.c.l.b16 %v273
    %v321 = vunpack.c.h.b16 %v273
    %v322 = vunpack.c.l.b16 %v274
    %v323 = vunpack.c.h.b16 %v274
    %v324 = vunpack.c.l.b16 %v275
    %v325 = vunpack.c.h.b16 %v275
    %v326 = vunpack.c.l.b16 %v276
    %v327 = vunpack.c.h.b16 %v276
    %v328 = vunpack.c.l.b16 %v277
    %v329 = vunpack.c.h.b16 %v277
    %v330 = vunpack.c.l.b16 %v278
    %v331 = vunpack.c.h.b16 %v278
    %v332 = vunpack.c.l.b16 %v279
    %v333 = vunpack.c.h.b16 %v279
    %v334 = vunpack.c.l.b16 %v280
    %v335 = vunpack.c.h.b16 %v280
    %v336 = vunpack.c.l.b16 %v281
    %v337 = vunpack.c.h.b16 %v281
    %v338 = vunpack.c.l.b16 %v282
    %v339 = vunpack.c.h.b16 %v282
    %v340 = vunpack.c.l.b16 %v283
    %v341 = vunpack.c.h.b16 %v283
    %v342 = vunpack.c.l.b16 %v284
    %v343 = vunpack.c.h.b16 %v284
    %v344 = vunpack.c.l.b16 %v285
    %v345 = vunpack.c.h.b16 %v285
    %v346 = vunpack.c.l.b16 %v286
    %v347 = vunpack.c.h.b16 %v286
    %v348 = vpack.c.b16 %v318, %v316
    %v349 = vpack.c.b16 %v319, %v317
    %v350 = vpack.c.b16 %v322, %v320
    %v351 = vpack.c.b16 %v323, %v321
    %v352 = vpack.c.b16 %v326, %v324
    %v353 = vpack.c.b16 %v327, %v325
    %v354 = vpack.c.b16 %v330, %v328
    %v355 = vpack.c.b16 %v331, %v329
    %v356 = vpack.c.b16 %v334, %v332
    %v357 = vpack.c.b16 %v335, %v333
    %v358 = vpack.c.b16 %v338, %v336
    %v359 = vpack.c.b16 %v339, %v337
    %v360 = vpack.c.b16 %v342, %v340
    %v361 = vpack.c.b16 %v343, %v341
    %v362 = vpack.c.b16 %v346, %v344
    %v363 = vpack.c.b16 %v347, %v345
    %380 = vmatprep.subr.bf16.mxu0 %v349
    %381 = vmatpush1.bf16.msra.mxu0 %v348
    %382 = vmatprep.subr.bf16.mxu0 %v351
    %383 = vmatpush1.bf16.msra.mxu0 %v350
    %384 = vmatprep.subr.bf16.mxu0 %v353
    %385 = vmatpush1.bf16.msra.mxu0 %v352
    %386 = vmatprep.subr.bf16.mxu0 %v355
    %387 = vmatpush1.bf16.msra.mxu0 %v354
    %388 = vmatprep.subr.bf16.mxu0 %v357
    %389 = vmatpush1.bf16.msra.mxu0 %v356
    %390 = vmatprep.subr.bf16.mxu0 %v359
    %391 = vmatpush1.bf16.msra.mxu0 %v358
    %392 = vmatprep.subr.bf16.mxu0 %v361
    %393 = vmatpush1.bf16.msra.mxu0 %v360
    %394 = vmatprep.subr.bf16.mxu0 %v363
    %395 = vmatpush1.bf16.msra.mxu0 %v362
    %396 = vmatprep.subr.bf16.mxu0 0
    %397 = vmatpush1.bf16.msra.mxu0 0
    %398 = vmatprep.subr.bf16.mxu0 0
    %399 = vmatpush1.bf16.msra.mxu0 0
    %400 = vmatprep.subr.bf16.mxu0 0
    %401 = vmatpush1.bf16.msra.mxu0 0
    %402 = vmatprep.subr.bf16.mxu0 0
    %403 = vmatpush1.bf16.msra.mxu0 0
    %404 = vmatprep.subr.bf16.mxu0 0
    %405 = vmatpush1.bf16.msra.mxu0 0
    %406 = vmatprep.subr.bf16.mxu0 0
    %407 = vmatpush1.bf16.msra.mxu0 0
    %408 = vmatprep.subr.bf16.mxu0 0
    %409 = vmatpush1.bf16.msra.mxu0 0
    %410 = vmatprep.subr.bf16.mxu0 0
    %411 = vmatpush1.bf16.msra.mxu0 0
    %412 = vmatprep.mubr.bf16.mxu0 0
    %413 = vmatmul.mubr.bf16.gmra.mrb[0].mxu0 %v288
    %v414 = vpop.f32.mrb[0].mxu0
    %v415 = vadd.f32 %v293, %v414
    %v416 = vpop.f32.mrb[0].mxu0
    %v417 = vadd.f32 %v297, %v416
    %v418 = vpop.f32.mrb[0].mxu0
    %v419 = vpop.f32.mrb[0].mxu0
    %420 = vdwg.mxu0
    %v421 = vmax.f32 %v417, -20.0
    %v422 = vmin.f32 %v421, 2.0
    %v423 = vmul.f32 %v422, 1.442695
    %v424 = vpow.pop %v423
    %v425 = vmul.f32 %v424, %v96
    %v426 = vadd.f32 %v415, %v425
    %v427 = vtanh.pop %v426
    %v428 = vmul.f32 %v96, -0.5
    %v429 = vmul.f32 %v428, %v96
    %v430 = vsub.f32 %v429, %v422
    %v431 = vsub.f32 %v430, 0.9189385
    %v432 = vsub.f32 0.6931472, %v426
    %v433 = vmul.f32 %v426, -2.0
    %v434 = vmax.f32 %v433, 0.0
    %v435 = vand.u32 2147483647, %v433
    %v436 = vsub.f32 0.0, %v435
    %v437 = vmul.f32 %v436, 1.442695
    %v438 = vpow.pop %v437
    %v439 = vadd.f32 %v438, 1.0
    %v440 = vlog2.pop %v439
    %v441 = vmul.f32 %v440, 0.6931472
    %v442 = vmul.f32 -0.5, %v438
    %v443 = vadd.f32 %v442, 1.0
    %v444 = vmul.f32 %v443, %v438
    %v445 = vand.u32 2147483647, %v438
    %vm446 = vcmp.lt.f32.partialorder %v445, 0.0004427343
    %v447 = vsel %vm446, %v444, %v441
    %v448 = vadd.f32 %v434, %v447
    %v449 = vsub.f32 %v432, %v448
    %v450 = vmul.f32 %v449, 2.0
    %v451 = vlaneseq
    %v452 = vand.u32 %v451, 127
    %vm453 = vcmp.lt.s32.totalorder %v452, 4
    %v454 = vsub.f32 %v431, %v450
    %v455 = vsel %vm453, %v454, 0.0
    %456 = vadd.xlane.f32.xlu0 %v455
    %v457 = vpop.xlane.xlu0 %456
    %vm458 = vcmp.eq.s32.totalorder %v452, 4
    %v459 = vsel %vm458, %v457, %v427
    %460 = vst [vmem:[#allocation11] sm:$0xff] %v459
    // Predicated region
    $region54: #{tpu_custom_call.1} parent=1 // pred_check
      _
    $region55: #{tpu_custom_call.1} parent=1 // pred_check_branch
      %462 = sbr.rel (0) target = $region57
    $region56: #{tpu_custom_call.1} parent=1 // pred_region
      %s464 = ssub.s32 128, 128
      %465 = vsyncadd [#allocation4], %s464
      %s467 = sshll.u32 [#allocation11], 4
      %s468 = int_to_ptr.vmem [resolvable:$true] %s467
      %470 = dma.vmem_to_hbm [thread:$0]  %s468, 128, %s8, [#allocation4]
    $region57: #{tpu_custom_call.1} parent=1 // pred_fallthru
      _
    // Predicated region
    $region58: #{tpu_custom_call.1} parent=1 // pred_check
      _
    $region59: #{tpu_custom_call.1} parent=1 // pred_check_branch
      %472 = sbr.rel (0) target = $region61
    $region60: #{tpu_custom_call.1} parent=1 // pred_region
      %473 = dma.done [#allocation4], 128
    $region61: #{tpu_custom_call.1} parent=1 // pred_fallthru
      _
    %474 = vsyncpa [#allocation3], 1
    %475 = vsyncpa [#allocation6], 1
    %476 = vsyncpa [#allocation9], 1
    %477 = vsyncpa [#allocation4], 1

</llo_original>
